<compile_context>
chip_gen: v7x
topology: tpu7x:2x2x1
jax: 0.10.0
libtpu: 0.0.40
codegen_flags: <defaults>
</compile_context>

<pallas_src>
import jax
import jax.numpy as jnp
from jax.experimental import pallas as pl
from jax.experimental.pallas import tpu as pltpu


def _gcl_fused_kernel(h_ref, adj_ref, w1_ref, b1_ref, w2_ref, b2_ref, out_ref):
    h = h_ref[...]                                    # (N, B*C), native dtype
    adj = adj_ref[...]                                # (N, N),   native dtype

    # Graph aggregation over nodes: agg[n, (b,c)] = sum_m adj[n,m] * h[m,(b,c)]
    agg = jnp.dot(adj, h, preferred_element_type=jnp.float32)

    # fc1 -> relu -> fc2 against block-diagonal kron(I_B, W) weights: each
    # batch's C-wide lane slice is transformed independently (same math as the
    # per-(n,b) Linear layers).  MXU inputs stay in native dtype, f32 accum.
    z1 = jnp.dot(h, w1_ref[...], preferred_element_type=jnp.float32)
    z1 = jnp.maximum(z1 + b1_ref[...].astype(jnp.float32), 0.0)
    z2 = jnp.dot(z1.astype(w2_ref.dtype), w2_ref[...],
                 preferred_element_type=jnp.float32)
    z2 = z2 + b2_ref[...].astype(jnp.float32)

    # Gate (EUP transcendentals, f32); values land in (-1, 1).
    pre = jnp.tanh(agg) * jax.nn.sigmoid(z2)

    # Global mean / unbiased std (torch.std default ddof=1), two-pass in f32.
    # Reduce lanes first, then sublanes; keep (1,1) blocks for broadcasting.
    cnt = pre.shape[0] * pre.shape[1]
    total = jnp.sum(jnp.sum(pre, axis=1, keepdims=True), axis=0, keepdims=True)
    mean = total / cnt                                # (1, 1)
    d = pre - mean
    var = jnp.sum(jnp.sum(d * d, axis=1, keepdims=True),
                  axis=0, keepdims=True) / (cnt - 1)  # (1, 1)

    # Normalize the f32 values, single down-cast at the store.
    out_ref[...] = (d * jax.lax.rsqrt(var)).astype(out_ref.dtype)


@jax.jit
def global_correlation_forward(hidden, adj, params):
    """hidden: (B, N, C), adj: (N, N). Returns (N, B, C) like the module."""
    B, N, C = hidden.shape
    w1, b1, w2, b2 = params
    assert w1.shape == (C, C) and w2.shape == (C, C), \
        "module only type-checks when input_size == output_size"
    K = B * C

    # Layout plumbing in the wrapper (no compute): (B,N,C) -> (N, B*C) slab,
    # block-diagonal weights / tiled biases so the kernel stays purely 2-D.
    h_nk = jnp.transpose(hidden, (1, 0, 2)).reshape(N, K)
    eye_b = jnp.eye(B, dtype=w1.dtype)
    w1_blk = jnp.kron(eye_b, w1)                       # (K, K)
    w2_blk = jnp.kron(eye_b, w2)                       # (K, K)
    b1_blk = jnp.tile(b1, (1, B))                      # (1, K)
    b2_blk = jnp.tile(b2, (1, B))                      # (1, K)

    def full(shape):
        return pl.BlockSpec(shape, lambda i, _s=shape: (0,) * len(_s))

    out_flat = pl.pallas_call(
        _gcl_fused_kernel,
        out_shape=jax.ShapeDtypeStruct((N, K), hidden.dtype),
        grid=(1,),
        in_specs=[
            full((N, K)),      # hidden slab
            full((N, N)),      # adj
            full((K, K)),      # kron(I_B, W1)
            full((1, K)),      # tiled b1
            full((K, K)),      # kron(I_B, W2)
            full((1, K)),      # tiled b2
        ],
        out_specs=full((N, K)),
        compiler_params=pltpu.CompilerParams(
            dimension_semantics=("arbitrary",)),
    )(h_nk, adj, w1_blk, b1_blk, w2_blk, b2_blk)

    # (N, B*C) is bit-identical to row-major (N, B, C): free reshape, no transpose.
    return out_flat.reshape(N, B, C)


def init_params(key, input_size, output_size, dtype=jnp.float32):
    """nn.Linear-style init; weights pre-transposed to (in, out)."""
    assert input_size == output_size, "module only type-checks when equal"
    ks = jax.random.split(key, 4)

    def lin(kw, kb, fan_in, fan_out):
        bound = 1.0 / jnp.sqrt(jnp.asarray(fan_in, jnp.float32))
        w = jax.random.uniform(kw, (fan_out, fan_in), dtype, -bound, bound)
        b = jax.random.uniform(kb, (fan_out,), dtype, -bound, bound)
        return w.T, b.reshape(1, -1)          # (in, out), (1, out)

    w1, b1 = lin(ks[0], ks[1], input_size, output_size)   # fc1
    w2, b2 = lin(ks[2], ks[3], output_size, output_size)  # fc2
    return (w1, b1, w2, b2)


def global_correlation_reference(hidden, adj, params):
    """Pure-JAX reference mirroring the PyTorch forward."""
    w1, b1, w2, b2 = params
    h = jnp.transpose(hidden, (1, 0, 2))                  # (N, B, C)
    out = jnp.einsum('nm,mbc->nbc', adj, h)
    z = jnp.maximum(h @ w1 + b1, 0.0)
    z = z @ w2 + b2
    out = jnp.tanh(out) * jax.nn.sigmoid(z)
    mean = jnp.mean(out)
    std = jnp.std(out, ddof=1)
    return (out - mean) / std


if __name__ == "__main__":
    batch, num_nodes, channels = 2, 16, 32   # input_size == output_size == 32

    key = jax.random.PRNGKey(0)
    k_h, k_a, k_p = jax.random.split(key, 3)

    hidden = jax.random.normal(k_h, (batch, num_nodes, channels), jnp.float32)
    adj = jax.random.uniform(k_a, (num_nodes, num_nodes), jnp.float32)
    params = init_params(k_p, channels, channels)

    out = global_correlation_forward(hidden, adj, params)
    out = jax.block_until_ready(out)

    out_ref = global_correlation_reference(hidden, adj, params)
    assert out.shape == (num_nodes, batch, channels)
    assert bool(jnp.allclose(out, out_ref, atol=1e-4, rtol=1e-4)), \
        float(jnp.max(jnp.abs(out - out_ref)))

    print("KERNEL_OK")
</pallas_src>

<mosaic_0001>
module attributes {stable_mosaic.version = 11 : i64} {
  func.func @_gcl_fused_kernel(%arg0: i32, %arg1: memref<16x64xf32, #tpu.memory_space<vmem>>, %arg2: memref<16x16xf32, #tpu.memory_space<vmem>>, %arg3: memref<64x64xf32, #tpu.memory_space<vmem>>, %arg4: memref<1x64xf32, #tpu.memory_space<vmem>>, %arg5: memref<64x64xf32, #tpu.memory_space<vmem>>, %arg6: memref<1x64xf32, #tpu.memory_space<vmem>>, %arg7: memref<16x64xf32, #tpu.memory_space<vmem>>) attributes {dimension_semantics = [#tpu.dimension_semantics<arbitrary>], iteration_bounds = array<i64: 1>, scalar_prefetch = 0 : i64, scratch_operands = 0 : i64, tpu.core_type = #tpu.core_type<tc>, window_params = [{pipeline_mode = #tpu.pipeline_mode<synchronous>, transform_indices = @transform_0, window_bounds = array<i64: 16, 64>}, {pipeline_mode = #tpu.pipeline_mode<synchronous>, transform_indices = @transform_1, window_bounds = array<i64: 16, 16>}, {pipeline_mode = #tpu.pipeline_mode<synchronous>, transform_indices = @transform_2, window_bounds = array<i64: 64, 64>}, {pipeline_mode = #tpu.pipeline_mode<synchronous>, transform_indices = @transform_3, window_bounds = array<i64: 1, 64>}, {pipeline_mode = #tpu.pipeline_mode<synchronous>, transform_indices = @transform_4, window_bounds = array<i64: 64, 64>}, {pipeline_mode = #tpu.pipeline_mode<synchronous>, transform_indices = @transform_5, window_bounds = array<i64: 1, 64>}, {pipeline_mode = #tpu.pipeline_mode<synchronous>, transform_indices = @transform_6, window_bounds = array<i64: 16, 64>}]} {
    %c0 = arith.constant 0 : index
    %c0_0 = arith.constant 0 : index
    %0 = vector.load %arg1[%c0, %c0_0] : memref<16x64xf32, #tpu.memory_space<vmem>>, vector<16x64xf32>
    %c0_1 = arith.constant 0 : index
    %c0_2 = arith.constant 0 : index
    %1 = vector.load %arg2[%c0_1, %c0_2] : memref<16x16xf32, #tpu.memory_space<vmem>>, vector<16x16xf32>
    %cst = arith.constant dense<0.000000e+00> : vector<16x64xf32>
    %2 = tpu.matmul %1, %0, %cst {dimension_numbers = #tpu.dot_dimension_numbers<[1], [0], [0], [1], [0, 0, 1, 1], [], []>} : vector<16x16xf32>, vector<16x64xf32>, vector<16x64xf32> -> vector<16x64xf32>
    %c0_3 = arith.constant 0 : index
    %c0_4 = arith.constant 0 : index
    %3 = vector.load %arg3[%c0_3, %c0_4] : memref<64x64xf32, #tpu.memory_space<vmem>>, vector<64x64xf32>
    %cst_5 = arith.constant dense<0.000000e+00> : vector<16x64xf32>
    %4 = tpu.matmul %0, %3, %cst_5 {dimension_numbers = #tpu.dot_dimension_numbers<[1], [0], [0], [1], [0, 0, 1, 1], [], []>} : vector<16x64xf32>, vector<64x64xf32>, vector<16x64xf32> -> vector<16x64xf32>
    %c0_6 = arith.constant 0 : index
    %c0_7 = arith.constant 0 : index
    %5 = vector.load %arg4[%c0_6, %c0_7] : memref<1x64xf32, #tpu.memory_space<vmem>>, vector<1x64xf32>
    %6 = vector.broadcast %5 : vector<1x64xf32> to vector<16x64xf32>
    %7 = arith.addf %4, %6 : vector<16x64xf32>
    %cst_8 = arith.constant 0.000000e+00 : f32
    %8 = vector.broadcast %cst_8 : f32 to vector<16x64xf32>
    %9 = arith.maximumf %7, %8 : vector<16x64xf32>
    %c0_9 = arith.constant 0 : index
    %c0_10 = arith.constant 0 : index
    %10 = vector.load %arg5[%c0_9, %c0_10] : memref<64x64xf32, #tpu.memory_space<vmem>>, vector<64x64xf32>
    %cst_11 = arith.constant dense<0.000000e+00> : vector<16x64xf32>
    %11 = tpu.matmul %9, %10, %cst_11 {dimension_numbers = #tpu.dot_dimension_numbers<[1], [0], [0], [1], [0, 0, 1, 1], [], []>} : vector<16x64xf32>, vector<64x64xf32>, vector<16x64xf32> -> vector<16x64xf32>
    %c0_12 = arith.constant 0 : index
    %c0_13 = arith.constant 0 : index
    %12 = vector.load %arg6[%c0_12, %c0_13] : memref<1x64xf32, #tpu.memory_space<vmem>>, vector<1x64xf32>
    %13 = vector.broadcast %12 : vector<1x64xf32> to vector<16x64xf32>
    %14 = arith.addf %11, %13 : vector<16x64xf32>
    %15 = math.tanh %2 : vector<16x64xf32>
    %16 = arith.negf %14 : vector<16x64xf32>
    %17 = math.exp %16 : vector<16x64xf32>
    %cst_14 = arith.constant 1.000000e+00 : f32
    %18 = vector.broadcast %cst_14 : f32 to vector<16x64xf32>
    %19 = arith.addf %18, %17 : vector<16x64xf32>
    %20 = arith.divf %18, %19 : vector<16x64xf32>
    %21 = arith.mulf %15, %20 : vector<16x64xf32>
    %cst_15 = arith.constant dense<0.000000e+00> : vector<16xf32>
    %22 = vector.multi_reduction <add>, %21, %cst_15 [1] : vector<16x64xf32> to vector<16xf32>
    %23 = vector.shape_cast %22 : vector<16xf32> to vector<16x1xf32>
    %cst_16 = arith.constant dense<0.000000e+00> : vector<1xf32>
    %24 = vector.multi_reduction <add>, %23, %cst_16 [0] : vector<16x1xf32> to vector<1xf32>
    %25 = vector.shape_cast %24 : vector<1xf32> to vector<1x1xf32>
    %cst_17 = arith.constant 1.024000e+03 : f32
    %26 = vector.broadcast %cst_17 : f32 to vector<1x1xf32>
    %27 = arith.divf %25, %26 : vector<1x1xf32>
    %28 = vector.broadcast %27 : vector<1x1xf32> to vector<16x64xf32>
    %29 = arith.subf %21, %28 : vector<16x64xf32>
    %30 = arith.mulf %29, %29 : vector<16x64xf32>
    %cst_18 = arith.constant dense<0.000000e+00> : vector<16xf32>
    %31 = vector.multi_reduction <add>, %30, %cst_18 [1] : vector<16x64xf32> to vector<16xf32>
    %32 = vector.shape_cast %31 : vector<16xf32> to vector<16x1xf32>
    %cst_19 = arith.constant dense<0.000000e+00> : vector<1xf32>
    %33 = vector.multi_reduction <add>, %32, %cst_19 [0] : vector<16x1xf32> to vector<1xf32>
    %34 = vector.shape_cast %33 : vector<1xf32> to vector<1x1xf32>
    %cst_20 = arith.constant 1.023000e+03 : f32
    %35 = vector.broadcast %cst_20 : f32 to vector<1x1xf32>
    %36 = arith.divf %34, %35 : vector<1x1xf32>
    %37 = math.rsqrt %36 : vector<1x1xf32>
    %38 = vector.broadcast %37 : vector<1x1xf32> to vector<16x64xf32>
    %39 = arith.mulf %29, %38 : vector<16x64xf32>
    %c0_21 = arith.constant 0 : index
    %c0_22 = arith.constant 0 : index
    %40 = vector.load %arg7[%c0_21, %c0_22] : memref<16x64xf32, #tpu.memory_space<vmem>>, vector<16x64xf32>
    tpu.vector_store %arg7[%c0_21, %c0_22], %39 {strides = array<i32>} : memref<16x64xf32, #tpu.memory_space<vmem>>, vector<16x64xf32>,
    return
  }
  func.func @transform_0(%arg0: i32) -> (i32, i32) {
    %c0_i32 = arith.constant 0 : i32
    %c0_i32_0 = arith.constant 0 : i32
    %c0_i32_1 = arith.constant 0 : i32
    return %c0_i32, %c0_i32_0 : i32, i32
  }
  func.func @transform_1(%arg0: i32) -> (i32, i32) {
    %c0_i32 = arith.constant 0 : i32
    %c0_i32_0 = arith.constant 0 : i32
    %c0_i32_1 = arith.constant 0 : i32
    return %c0_i32, %c0_i32_0 : i32, i32
  }
  func.func @transform_2(%arg0: i32) -> (i32, i32) {
    %c0_i32 = arith.constant 0 : i32
    %c0_i32_0 = arith.constant 0 : i32
    %c0_i32_1 = arith.constant 0 : i32
    return %c0_i32, %c0_i32_0 : i32, i32
  }
  func.func @transform_3(%arg0: i32) -> (i32, i32) {
    %c0_i32 = arith.constant 0 : i32
    %c0_i32_0 = arith.constant 0 : i32
    %c0_i32_1 = arith.constant 0 : i32
    return %c0_i32, %c0_i32_0 : i32, i32
  }
  func.func @transform_4(%arg0: i32) -> (i32, i32) {
    %c0_i32 = arith.constant 0 : i32
    %c0_i32_0 = arith.constant 0 : i32
    %c0_i32_1 = arith.constant 0 : i32
    return %c0_i32, %c0_i32_0 : i32, i32
  }
  func.func @transform_5(%arg0: i32) -> (i32, i32) {
    %c0_i32 = arith.constant 0 : i32
    %c0_i32_0 = arith.constant 0 : i32
    %c0_i32_1 = arith.constant 0 : i32
    return %c0_i32, %c0_i32_0 : i32, i32
  }
  func.func @transform_6(%arg0: i32) -> (i32, i32) {
    %c0_i32 = arith.constant 0 : i32
    %c0_i32_0 = arith.constant 0 : i32
    %c0_i32_1 = arith.constant 0 : i32
    return %c0_i32, %c0_i32_0 : i32, i32
  }
}

</mosaic_0001>

<llo_original>
// kernel: global_correlation_forward.1
$region0: #{global_correlation_forward.1}
  #allocation0 [shape = 'u32[]', space=smem, size = 0x4, offset = 0x4, fixed_abs, tag = 'smem constant byte address 0x4 - core index']
  #allocation1 [shape = 'u32[144,128]{1,0:T(1,128)}', space=vmem, size = 0x12000, scoped, tag = 'internal scratch']
  %s0 = inlined_call_operand.vmem [shape: f32[16,64], index: 0, kind: input, shape index: {}]
  %s1 = inlined_call_operand.vmem [shape: f32[16,16], index: 1, kind: input, shape index: {}]
  %s2 = inlined_call_operand.vmem [shape: f32[64,64], index: 2, kind: input, shape index: {}]
  %s3 = inlined_call_operand.vmem [shape: f32[1,64], index: 3, kind: input, shape index: {}]
  %s4 = inlined_call_operand.vmem [shape: f32[64,64], index: 4, kind: input, shape index: {}]
  %s5 = inlined_call_operand.vmem [shape: f32[1,64], index: 5, kind: input, shape index: {}]
  %s6 = inlined_call_operand.vmem [shape: f32[16,64], index: 6, kind: output, shape index: {}]
  %s7 = sld [smem:[#allocation0]]
  $region34: #{global_correlation_forward.1} parent=0
    _
  %s9 = ssub.s32 1, %s7
  %s10 = scalar_select 0, %s9, %s7
  // Predicated region
  $region2: #{global_correlation_forward.1} parent=0 // pred_check
    _
  $region3: #{global_correlation_forward.1} parent=0 // pred_check_branch
    %12 = sbr.rel (0) target = $region5
  $region4: #{global_correlation_forward.1} parent=0 // pred_region
    _
  $region5: #{global_correlation_forward.1} parent=0 // pred_fallthru
    _
  // Predicated region
  $region6: #{global_correlation_forward.1} parent=0 // pred_check
    _
  $region7: #{global_correlation_forward.1} parent=0 // pred_check_branch
    %14 = sbr.rel (0) target = $region9
  $region8: #{global_correlation_forward.1} parent=0 // pred_region
    _
  $region9: #{global_correlation_forward.1} parent=0 // pred_fallthru
    _
  // Predicated region
  $region10: #{global_correlation_forward.1} parent=0 // pred_check
    _
  $region11: #{global_correlation_forward.1} parent=0 // pred_check_branch
    %16 = sbr.rel (0) target = $region13
  $region12: #{global_correlation_forward.1} parent=0 // pred_region
    _
  $region13: #{global_correlation_forward.1} parent=0 // pred_fallthru
    _
  // Predicated region
  $region14: #{global_correlation_forward.1} parent=0 // pred_check
    _
  $region15: #{global_correlation_forward.1} parent=0 // pred_check_branch
    %18 = sbr.rel (0) target = $region17
  $region16: #{global_correlation_forward.1} parent=0 // pred_region
    _
  $region17: #{global_correlation_forward.1} parent=0 // pred_fallthru
    _
  // Predicated region
  $region18: #{global_correlation_forward.1} parent=0 // pred_check
    _
  $region19: #{global_correlation_forward.1} parent=0 // pred_check_branch
    %20 = sbr.rel (0) target = $region21
  $region20: #{global_correlation_forward.1} parent=0 // pred_region
    _
  $region21: #{global_correlation_forward.1} parent=0 // pred_fallthru
    _
  // Predicated region
  $region22: #{global_correlation_forward.1} parent=0 // pred_check
    _
  $region23: #{global_correlation_forward.1} parent=0 // pred_check_branch
    %22 = sbr.rel (0) target = $region25
  $region24: #{global_correlation_forward.1} parent=0 // pred_region
    _
  $region25: #{global_correlation_forward.1} parent=0 // pred_fallthru
    _
  %v23 = vld [vmem:[%s0] sm:$0xff]
  %v24 = vld [vmem:[%s0 + $0x8] sm:$0xff]
  %v25 = vld [vmem:[%s1] sm:$0xff]
  %v26 = vld [vmem:[%s1 + $0x8] sm:$0xff]
  %vm27 = vcmask 130048
  %v29 = vsel %vm27, %v25, 0
  %v32 = vsel %vm27, %v26, 0
  %34 = vmatprep.subr.mxu0 0.0
  %35 = vmatpush1.msra.mxu0 %v23
  %36 = vmatprep.subr.mxu0 0.0
  %37 = vmatpush1.msra.mxu0 %v24
  %38 = vmatprep.subr.mxu0 0.0
  %39 = vmatpush1.msra.mxu0 0.0
  %40 = vmatprep.subr.mxu0 0.0
  %41 = vmatpush1.msra.mxu0 0.0
  %42 = vmatprep.subr.mxu0 0.0
  %43 = vmatpush1.msra.mxu0 0.0
  %44 = vmatprep.subr.mxu0 0.0
  %45 = vmatpush1.msra.mxu0 0.0
  %46 = vmatprep.subr.mxu0 0.0
  %47 = vmatpush1.msra.mxu0 0.0
  %48 = vmatprep.subr.mxu0 0.0
  %49 = vmatpush1.msra.mxu0 0.0
  %50 = vmatprep.subr.mxu0 0.0
  %51 = vmatpush1.msra.mxu0 0.0
  %52 = vmatprep.subr.mxu0 0.0
  %53 = vmatpush1.msra.mxu0 0.0
  %54 = vmatprep.subr.mxu0 0.0
  %55 = vmatpush1.msra.mxu0 0.0
  %56 = vmatprep.subr.mxu0 0.0
  %57 = vmatpush1.msra.mxu0 0.0
  %58 = vmatprep.subr.mxu0 0.0
  %59 = vmatpush1.msra.mxu0 0.0
  %60 = vmatprep.subr.mxu0 0.0
  %61 = vmatpush1.msra.mxu0 0.0
  %62 = vmatprep.subr.mxu0 0.0
  %63 = vmatpush1.msra.mxu0 0.0
  %64 = vmatprep.subr.mxu0 0.0
  %65 = vmatpush1.msra.mxu0 0.0
  %66 = vmatprep.subr.mxu0 0.0
  %67 = vmatpush1.msra.mxu0 0.0
  %68 = vmatprep.subr.mxu0 0.0
  %69 = vmatpush1.msra.mxu0 0.0
  %70 = vmatprep.subr.mxu0 0.0
  %71 = vmatpush1.msra.mxu0 0.0
  %72 = vmatprep.subr.mxu0 0.0
  %73 = vmatpush1.msra.mxu0 0.0
  %74 = vmatprep.subr.mxu0 0.0
  %75 = vmatpush1.msra.mxu0 0.0
  %76 = vmatprep.subr.mxu0 0.0
  %77 = vmatpush1.msra.mxu0 0.0
  %78 = vmatprep.subr.mxu0 0.0
  %79 = vmatpush1.msra.mxu0 0.0
  %80 = vmatprep.subr.mxu0 0.0
  %81 = vmatpush1.msra.mxu0 0.0
  %82 = vmatprep.subr.mxu0 0.0
  %83 = vmatpush1.msra.mxu0 0.0
  %84 = vmatprep.subr.mxu0 0.0
  %85 = vmatpush1.msra.mxu0 0.0
  %86 = vmatprep.subr.mxu0 0.0
  %87 = vmatpush1.msra.mxu0 0.0
  %88 = vmatprep.subr.mxu0 0.0
  %89 = vmatpush1.msra.mxu0 0.0
  %90 = vmatprep.subr.mxu0 0.0
  %91 = vmatpush1.msra.mxu0 0.0
  %92 = vmatprep.subr.mxu0 0.0
  %93 = vmatpush1.msra.mxu0 0.0
  %94 = vmatprep.subr.mxu0 0.0
  %95 = vmatpush1.msra.mxu0 0.0
  %96 = vmatprep.subr.mxu0 0.0
  %97 = vmatpush1.msra.mxu0 0.0
  %98 = vmatprep.mubr.f32.mxu0 0.0
  %99 = vmatmul.mubr.f32.gmra.mrb[0].mxu0 %v29
  %v100 = vpop.f32.mrb[0].mxu0
  %v101 = vadd.f32 0.0, %v100
  %v102 = vpop.f32.mrb[0].mxu0
  %103 = vmatprep.mubr.f32.mxu0 0.0
  %104 = vmatmul.mubr.f32.gmra.mrb[0].mxu0 %v32
  %v105 = vpop.f32.mrb[0].mxu0
  %v106 = vadd.f32 0.0, %v105
  %v107 = vpop.f32.mrb[0].mxu0
  %108 = vdwg.mxu0
  %v109 = vld [vmem:[%s2] sm:$0xff]
  %v110 = vld [vmem:[%s2 + $0x8] sm:$0xff]
  %v111 = vld [vmem:[%s2 + $0x10] sm:$0xff]
  %v112 = vld [vmem:[%s2 + $0x18] sm:$0xff]
  %v113 = vld [vmem:[%s2 + $0x20] sm:$0xff]
  %v114 = vld [vmem:[%s2 + $0x28] sm:$0xff]
  %v115 = vld [vmem:[%s2 + $0x30] sm:$0xff]
  %v116 = vld [vmem:[%s2 + $0x38] sm:$0xff]
  %v117 = vld [vmem:[%s3] sm:$0x1]
  %v119 = vlaneseq
  %v120 = vshrl.u32 %v119, 7
  %v121 = vsub.s32 0, %v120
  %v122 = vrot.slane %v117, %v121
  %vm124 = vcmask 523264
  %v126 = vsel %vm124, %v23, 0
  %v129 = vsel %vm124, %v24, 0
  %131 = vmatprep.subr.mxu0 0.0
  %132 = vmatpush1.msra.mxu0 %v109
  %133 = vmatprep.subr.mxu0 0.0
  %134 = vmatpush1.msra.mxu0 %v110
  %135 = vmatprep.subr.mxu0 0.0
  %136 = vmatpush1.msra.mxu0 %v111
  %137 = vmatprep.subr.mxu0 0.0
  %138 = vmatpush1.msra.mxu0 %v112
  %139 = vmatprep.subr.mxu0 0.0
  %140 = vmatpush1.msra.mxu0 %v113
  %141 = vmatprep.subr.mxu0 0.0
  %142 = vmatpush1.msra.mxu0 %v114
  %143 = vmatprep.subr.mxu0 0.0
  %144 = vmatpush1.msra.mxu0 %v115
  %145 = vmatprep.subr.mxu0 0.0
  %146 = vmatpush1.msra.mxu0 %v116
  %147 = vmatprep.subr.mxu0 0.0
  %148 = vmatpush1.msra.mxu0 0.0
  %149 = vmatprep.subr.mxu0 0.0
  %150 = vmatpush1.msra.mxu0 0.0
  %151 = vmatprep.subr.mxu0 0.0
  %152 = vmatpush1.msra.mxu0 0.0
  %153 = vmatprep.subr.mxu0 0.0
  %154 = vmatpush1.msra.mxu0 0.0
  %155 = vmatprep.subr.mxu0 0.0
  %156 = vmatpush1.msra.mxu0 0.0
  %157 = vmatprep.subr.mxu0 0.0
  %158 = vmatpush1.msra.mxu0 0.0
  %159 = vmatprep.subr.mxu0 0.0
  %160 = vmatpush1.msra.mxu0 0.0
  %161 = vmatprep.subr.mxu0 0.0
  %162 = vmatpush1.msra.mxu0 0.0
  %163 = vmatprep.subr.mxu0 0.0
  %164 = vmatpush1.msra.mxu0 0.0
  %165 = vmatprep.subr.mxu0 0.0
  %166 = vmatpush1.msra.mxu0 0.0
  %167 = vmatprep.subr.mxu0 0.0
  %168 = vmatpush1.msra.mxu0 0.0
  %169 = vmatprep.subr.mxu0 0.0
  %170 = vmatpush1.msra.mxu0 0.0
  %171 = vmatprep.subr.mxu0 0.0
  %172 = vmatpush1.msra.mxu0 0.0
  %173 = vmatprep.subr.mxu0 0.0
  %174 = vmatpush1.msra.mxu0 0.0
  %175 = vmatprep.subr.mxu0 0.0
  %176 = vmatpush1.msra.mxu0 0.0
  %177 = vmatprep.subr.mxu0 0.0
  %178 = vmatpush1.msra.mxu0 0.0
  %179 = vmatprep.subr.mxu0 0.0
  %180 = vmatpush1.msra.mxu0 0.0
  %181 = vmatprep.subr.mxu0 0.0
  %182 = vmatpush1.msra.mxu0 0.0
  %183 = vmatprep.subr.mxu0 0.0
  %184 = vmatpush1.msra.mxu0 0.0
  %185 = vmatprep.subr.mxu0 0.0
  %186 = vmatpush1.msra.mxu0 0.0
  %187 = vmatprep.subr.mxu0 0.0
  %188 = vmatpush1.msra.mxu0 0.0
  %189 = vmatprep.subr.mxu0 0.0
  %190 = vmatpush1.msra.mxu0 0.0
  %191 = vmatprep.subr.mxu0 0.0
  %192 = vmatpush1.msra.mxu0 0.0
  %193 = vmatprep.subr.mxu0 0.0
  %194 = vmatpush1.msra.mxu0 0.0
  %195 = vmatprep.mubr.f32.mxu0 0.0
  %196 = vmatmul.mubr.f32.gmra.mrb[0].mxu0 %v126
  %v197 = vpop.f32.mrb[0].mxu0
  %v198 = vadd.f32 %v122, %v197
  %v199 = vpop.f32.mrb[0].mxu0
  %200 = vmatprep.mubr.f32.mxu0 0.0
  %201 = vmatmul.mubr.f32.gmra.mrb[0].mxu0 %v129
  %v202 = vpop.f32.mrb[0].mxu0
  %v203 = vadd.f32 %v122, %v202
  %v204 = vpop.f32.mrb[0].mxu0
  %205 = vdwg.mxu0
  %v206 = vmax.f32 %v198, 0.0
  %v207 = vmax.f32 %v203, 0.0
  %v208 = vld [vmem:[%s4] sm:$0xff]
  %v209 = vld [vmem:[%s4 + $0x8] sm:$0xff]
  %v210 = vld [vmem:[%s4 + $0x10] sm:$0xff]
  %v211 = vld [vmem:[%s4 + $0x18] sm:$0xff]
  %v212 = vld [vmem:[%s4 + $0x20] sm:$0xff]
  %v213 = vld [vmem:[%s4 + $0x28] sm:$0xff]
  %v214 = vld [vmem:[%s4 + $0x30] sm:$0xff]
  %v215 = vld [vmem:[%s4 + $0x38] sm:$0xff]
  %v216 = vld [vmem:[%s5] sm:$0x1]
  %v218 = vlaneseq
  %v219 = vshrl.u32 %v218, 7
  %v220 = vsub.s32 0, %v219
  %v221 = vrot.slane %v216, %v220
  %v224 = vsel %vm124, %v206, 0
  %v227 = vsel %vm124, %v207, 0
  %229 = vmatprep.subr.mxu0 0.0
  %230 = vmatpush1.msra.mxu0 %v208
  %231 = vmatprep.subr.mxu0 0.0
  %232 = vmatpush1.msra.mxu0 %v209
  %233 = vmatprep.subr.mxu0 0.0
  %234 = vmatpush1.msra.mxu0 %v210
  %235 = vmatprep.subr.mxu0 0.0
  %236 = vmatpush1.msra.mxu0 %v211
  %237 = vmatprep.subr.mxu0 0.0
  %238 = vmatpush1.msra.mxu0 %v212
  %239 = vmatprep.subr.mxu0 0.0
  %240 = vmatpush1.msra.mxu0 %v213
  %241 = vmatprep.subr.mxu0 0.0
  %242 = vmatpush1.msra.mxu0 %v214
  %243 = vmatprep.subr.mxu0 0.0
  %244 = vmatpush1.msra.mxu0 %v215
  %245 = vmatprep.subr.mxu0 0.0
  %246 = vmatpush1.msra.mxu0 0.0
  %247 = vmatprep.subr.mxu0 0.0
  %248 = vmatpush1.msra.mxu0 0.0
  %249 = vmatprep.subr.mxu0 0.0
  %250 = vmatpush1.msra.mxu0 0.0
  %251 = vmatprep.subr.mxu0 0.0
  %252 = vmatpush1.msra.mxu0 0.0
  %253 = vmatprep.subr.mxu0 0.0
  %254 = vmatpush1.msra.mxu0 0.0
  %255 = vmatprep.subr.mxu0 0.0
  %256 = vmatpush1.msra.mxu0 0.0
  %257 = vmatprep.subr.mxu0 0.0
  %258 = vmatpush1.msra.mxu0 0.0
  %259 = vmatprep.subr.mxu0 0.0
  %260 = vmatpush1.msra.mxu0 0.0
  %261 = vmatprep.subr.mxu0 0.0
  %262 = vmatpush1.msra.mxu0 0.0
  %263 = vmatprep.subr.mxu0 0.0
  %264 = vmatpush1.msra.mxu0 0.0
  %265 = vmatprep.subr.mxu0 0.0
  %266 = vmatpush1.msra.mxu0 0.0
  %267 = vmatprep.subr.mxu0 0.0
  %268 = vmatpush1.msra.mxu0 0.0
  %269 = vmatprep.subr.mxu0 0.0
  %270 = vmatpush1.msra.mxu0 0.0
  %271 = vmatprep.subr.mxu0 0.0
  %272 = vmatpush1.msra.mxu0 0.0
  %273 = vmatprep.subr.mxu0 0.0
  %274 = vmatpush1.msra.mxu0 0.0
  %275 = vmatprep.subr.mxu0 0.0
  %276 = vmatpush1.msra.mxu0 0.0
  %277 = vmatprep.subr.mxu0 0.0
  %278 = vmatpush1.msra.mxu0 0.0
  %279 = vmatprep.subr.mxu0 0.0
  %280 = vmatpush1.msra.mxu0 0.0
  %281 = vmatprep.subr.mxu0 0.0
  %282 = vmatpush1.msra.mxu0 0.0
  %283 = vmatprep.subr.mxu0 0.0
  %284 = vmatpush1.msra.mxu0 0.0
  %285 = vmatprep.subr.mxu0 0.0
  %286 = vmatpush1.msra.mxu0 0.0
  %287 = vmatprep.subr.mxu0 0.0
  %288 = vmatpush1.msra.mxu0 0.0
  %289 = vmatprep.subr.mxu0 0.0
  %290 = vmatpush1.msra.mxu0 0.0
  %291 = vmatprep.subr.mxu0 0.0
  %292 = vmatpush1.msra.mxu0 0.0
  %293 = vmatprep.mubr.f32.mxu0 0.0
  %294 = vmatmul.mubr.f32.gmra.mrb[0].mxu0 %v224
  %v295 = vpop.f32.mrb[0].mxu0
  %v296 = vadd.f32 %v221, %v295
  %v297 = vpop.f32.mrb[0].mxu0
  %298 = vmatprep.mubr.f32.mxu0 0.0
  %299 = vmatmul.mubr.f32.gmra.mrb[0].mxu0 %v227
  %v300 = vpop.f32.mrb[0].mxu0
  %v301 = vadd.f32 %v221, %v300
  %v302 = vpop.f32.mrb[0].mxu0
  %303 = vdwg.mxu0
  %v304 = vtanh.pop %v101
  %v305 = vtanh.pop %v106
  %v306 = vxor.u32 %v296, 2147483648
  %v307 = vxor.u32 %v301, 2147483648
  %v308 = vmul.f32 %v306, 1.442695
  %v309 = vpow.pop %v308
  %v310 = vmul.f32 %v307, 1.442695
  %v311 = vpow.pop %v310
  %v312 = vadd.f32 %v309, 1.0
  %v313 = vadd.f32 %v311, 1.0
  %v314 = vrcp.pop %v312
  %v315 = vmul.f32 1.0, %v314
  %v316 = vrcp.pop %v313
  %v317 = vmul.f32 1.0, %v316
  %v318 = vmul.f32 %v304, %v315
  %v319 = vmul.f32 %v305, %v317
  %v320 = vsel %vm124, %v318, 0.0
  %321 = vadd.xlane.f32.xlu0 %v320
  %v322 = vpop.xlane.xlu0 %321
  %v323 = vsel %vm124, %v319, 0.0
  %324 = vadd.xlane.f32.xlu0 %v323
  %v325 = vpop.xlane.xlu0 %324
  %v326 = vadd.f32 %v322, %v325
  %v327 = vrot.slane %v326, 4
  %v328 = vadd.f32 %v326, %v327
  %v329 = vrot.slane %v328, 2
  %v330 = vadd.f32 %v328, %v329
  %v331 = vrot.slane %v330, 1
  %v332 = vadd.f32 %v330, %v331
  %v333 = vrcp.pop 1024.0
  %v334 = vmul.f32 %v332, %v333
  %v335 = vsub.f32 %v318, %v334
  %v336 = vsub.f32 %v319, %v334
  %v337 = vmul.f32 %v335, %v335
  %v338 = vmul.f32 %v336, %v336
  %v339 = vsel %vm124, %v337, 0.0
  %340 = vadd.xlane.f32.xlu0 %v339
  %v341 = vpop.xlane.xlu0 %340
  %v342 = vsel %vm124, %v338, 0.0
  %343 = vadd.xlane.f32.xlu0 %v342
  %v344 = vpop.xlane.xlu0 %343
  %v345 = vadd.f32 %v341, %v344
  %v346 = vrot.slane %v345, 4
  %v347 = vadd.f32 %v345, %v346
  %v348 = vrot.slane %v347, 2
  %v349 = vadd.f32 %v347, %v348
  %v350 = vrot.slane %v349, 1
  %v351 = vadd.f32 %v349, %v350
  %v352 = vrcp.pop 1023.0
  %v353 = vmul.f32 %v351, %v352
  %v354 = vrsqrt.pop %v353
  %v355 = vmul.f32 %v335, %v354
  %v356 = vmul.f32 %v336, %v354
  %357 = vst.msk [vmem:[%s6] sm:$0xff] %vm124, %v355
  %358 = vst.msk [vmem:[%s6 + $0x8] sm:$0xff] %vm124, %v356
  // Predicated region
  $region26: #{global_correlation_forward.1} parent=0 // pred_check
    _
  $region27: #{global_correlation_forward.1} parent=0 // pred_check_branch
    %360 = sbr.rel (0) target = $region29
  $region28: #{global_correlation_forward.1} parent=0 // pred_region
    _
  $region29: #{global_correlation_forward.1} parent=0 // pred_fallthru
    _
  // Predicated region
  $region30: #{global_correlation_forward.1} parent=0 // pred_check
    _
  $region31: #{global_correlation_forward.1} parent=0 // pred_check_branch
    %362 = sbr.rel (0) target = $region33
  $region32: #{global_correlation_forward.1} parent=0 // pred_region
    _
  $region33: #{global_correlation_forward.1} parent=0 // pred_fallthru
    _

</llo_original>
